<compile_context>
chip_gen: v7x
topology: tpu7x:2x2x1
jax: 0.10.0
libtpu: 0.0.40
codegen_flags: <defaults>
</compile_context>

<pallas_src>
import jax
import jax.numpy as jnp
from jax import lax
from jax.experimental import pallas as pl
from jax.experimental.pallas import tpu as pltpu

_LANE = 128


def _round_up(x, m):
    return ((x + m - 1) // m) * m


def _tensorcores_per_chip():
    # v7x exposes 2 TensorCores per chip (parallel grid axes are sharded
    # across them); v5e/v6e have 1.  Default to 1 if detection fails.
    try:
        kind = jax.devices()[0].device_kind.lower()
    except Exception:
        return 1
    return 2 if "v7" in kind else 1


# ---------------------------------------------------------------------------
# 1) h_sigmoid: relu6(x + 3) / 6   (elementwise)
# ---------------------------------------------------------------------------
def _hard_sigmoid_kernel(x_ref, o_ref):
    x = x_ref[...].astype(jnp.float32)
    o_ref[...] = (jnp.clip(x + 3.0, 0.0, 6.0) * (1.0 / 6.0)).astype(o_ref.dtype)


def _elementwise_call(kernel, x2d, flops_per_elem):
    rows, lane = x2d.shape
    # 4096x128 f32 blocks = 2 MiB; in+out double-buffered = 8 MiB.  That is
    # already ~85% of the HBM roofline and safe on every generation's default
    # scoped-VMEM limit (v5e 16 MiB, v6e/v7x 32 MiB), so no vmem override.
    target = 4096
    if rows > target:
        block_rows = target
    elif _tensorcores_per_chip() >= 2 and rows > 16:
        # v7x: give each TensorCore a block even for small inputs.
        block_rows = max(16, _round_up(pl.cdiv(rows, 2), 16))
    else:
        # 1-TC chips (v5e/v6e): the grid is a serial loop, so one block
        # minimizes the ~0.35us/step fixed overhead for small inputs.
        block_rows = rows
    grid = (pl.cdiv(rows, block_rows),)

    n = rows * lane
    itemsize = x2d.dtype.itemsize
    cost = pl.CostEstimate(
        flops=flops_per_elem * n,
        transcendentals=0,
        bytes_accessed=2 * n * itemsize,
    )
    return pl.pallas_call(
        kernel,
        out_shape=jax.ShapeDtypeStruct((rows, lane), x2d.dtype),
        grid_spec=pltpu.PrefetchScalarGridSpec(
            num_scalar_prefetch=0,
            grid=grid,
            in_specs=[pl.BlockSpec((block_rows, lane), lambda i: (i, 0))],
            out_specs=pl.BlockSpec((block_rows, lane), lambda i: (i, 0)),
        ),
        compiler_params=pltpu.CompilerParams(
            dimension_semantics=("parallel",),
        ),
        cost_estimate=cost,
    )(x2d)


def hard_sigmoid(x):
    """h_sigmoid (module semantics, h_max=1): relu6(x + 3) / 6.  Any shape."""
    orig_shape = x.shape
    n = x.size
    if n == 0:
        return x
    x_flat = x.reshape(-1)
    pad = (-n) % _LANE
    if pad:
        # Non-128-aligned total size: pad the flat input by <128 elements
        # (single cheap pad) instead of concatenating the full output after.
        # Typical conv activations (C multiple of 128) hit the zero-pad path.
        x_flat = jnp.pad(x_flat, (0, pad))
    out_flat = _elementwise_call(
        _hard_sigmoid_kernel, x_flat.reshape(-1, _LANE), 3
    ).reshape(-1)
    if pad:
        out_flat = out_flat[:n]
    return out_flat.reshape(orig_shape)


# ---------------------------------------------------------------------------
# 2) Fused inference decode: DFL + dist2bbox(xywh) + strides + cls sigmoid
# ---------------------------------------------------------------------------
def _detect_decode_kernel(box_ref, cls_ref, anc_ref, str_ref, y_ref):
    reg_max = box_ref.shape[1] // 4
    nc = cls_ref.shape[1]
    a_blk = box_ref.shape[2]

    box = box_ref[0].astype(jnp.float32).reshape(4, reg_max, a_blk)
    # DFL expectation without materializing the softmax: the divide over the
    # full (4, reg_max, a) tensor is replaced by one divide on the (4, a) sums.
    m = jnp.max(box, axis=1, keepdims=True)
    e = jnp.exp(box - m)
    bins = lax.broadcasted_iota(jnp.int32, (reg_max, a_blk), 0).astype(jnp.float32)
    num = jnp.sum(e * bins[None, :, :], axis=1)          # (4, a)
    den = jnp.sum(e, axis=1)                             # (4, a)
    dist = num / den                                     # lt, rb

    lt = dist[0:2]
    rb = dist[2:4]
    anchors = anc_ref[...].astype(jnp.float32)           # (2, a)
    stride = str_ref[...].astype(jnp.float32)            # (1, a)

    # Store dbox / sigmoid(cls) straight into the output tile: no (4+nc, a)
    # concat temp and no sublane shift of the whole cls block.
    y_ref[0, 0:2, :] = ((anchors + (rb - lt) * 0.5) * stride).astype(y_ref.dtype)
    y_ref[0, 2:4, :] = ((lt + rb) * stride).astype(y_ref.dtype)
    y_ref[0, 4:4 + nc, :] = jax.nn.sigmoid(
        cls_ref[0].astype(jnp.float32)
    ).astype(y_ref.dtype)


def _pick_a_block(A, b, max_block=2048):
    a_block = min(max_block, _round_up(A, _LANE))
    # v7x: keep at least 2 parallel grid steps so both TensorCores get work
    # on this mem-bound kernel (v5e/v6e: single TC, larger blocks win).
    if _tensorcores_per_chip() >= 2 and b * pl.cdiv(A, a_block) < 2 and A > _LANE:
        a_block = _round_up(pl.cdiv(A, 2), _LANE)
    return max(_LANE, a_block)


def detect_decode(box, cls, anchors, strides, *, a_block=None, out_dtype=None):
    """box: (b, 4*reg_max, A), cls: (b, nc, A), anchors: (2, A), strides: (1, A).
    Returns y = cat(dbox_xywh * strides, sigmoid(cls)) of shape (b, 4+nc, A)."""
    b, c4, A = box.shape
    nc = cls.shape[1]
    out_c = 4 + nc
    out_dtype = box.dtype if out_dtype is None else out_dtype
    if a_block is None:
        a_block = _pick_a_block(A, b)
    # Anchor axis outermost so the (2, a_block)/(1, a_block) anchor/stride
    # tiles stay resident across the batch axis instead of being re-fetched.
    grid = (pl.cdiv(A, a_block), b)

    out_item = jnp.dtype(out_dtype).itemsize
    cost = pl.CostEstimate(
        flops=b * A * (6 * c4 + 2 * nc + 16),
        transcendentals=b * A * (c4 + nc),
        bytes_accessed=(box.size * box.dtype.itemsize
                        + cls.size * cls.dtype.itemsize
                        + anchors.size * anchors.dtype.itemsize
                        + strides.size * strides.dtype.itemsize
                        + b * out_c * A * out_item),
    )
    return pl.pallas_call(
        _detect_decode_kernel,
        out_shape=jax.ShapeDtypeStruct((b, out_c, A), out_dtype),
        grid_spec=pltpu.PrefetchScalarGridSpec(
            num_scalar_prefetch=0,
            grid=grid,
            in_specs=[
                pl.BlockSpec((1, c4, a_block), lambda j, i: (i, 0, j)),
                pl.BlockSpec((1, nc, a_block), lambda j, i: (i, 0, j)),
                pl.BlockSpec((2, a_block), lambda j, i: (0, j)),
                pl.BlockSpec((1, a_block), lambda j, i: (0, j)),
            ],
            out_specs=pl.BlockSpec((1, out_c, a_block), lambda j, i: (i, 0, j)),
        ),
        compiler_params=pltpu.CompilerParams(
            dimension_semantics=("parallel", "parallel"),
        ),
        cost_estimate=cost,
    )(box, cls, anchors, strides)


# ---------------------------------------------------------------------------
# Host-side helpers (anchors + pure-JAX references)
# ---------------------------------------------------------------------------
def _make_anchors(hw_list, stride_list, offset=0.5):
    pts, strs = [], []
    for (h, w), s in zip(hw_list, stride_list):
        sx = jnp.arange(w, dtype=jnp.float32) + offset
        sy = jnp.arange(h, dtype=jnp.float32) + offset
        syy, sxx = jnp.meshgrid(sy, sx, indexing="ij")
        pts.append(jnp.stack((sxx, syy), -1).reshape(-1, 2))
        strs.append(jnp.full((h * w, 1), float(s), dtype=jnp.float32))
    return jnp.concatenate(pts, 0).T, jnp.concatenate(strs, 0).T  # (2,A), (1,A)


def _decode_ref(box, cls, anchors, strides, reg_max=16):
    b, _, a = box.shape
    p = jax.nn.softmax(box.reshape(b, 4, reg_max, a), axis=2)
    bins = jnp.arange(reg_max, dtype=jnp.float32).reshape(1, 1, reg_max, 1)
    dist = jnp.sum(p * bins, axis=2)                  # (b, 4, a)
    lt, rb = dist[:, :2], dist[:, 2:]
    anc = anchors[None]
    c_xy = anc + (rb - lt) * 0.5
    wh = lt + rb
    dbox = jnp.concatenate([c_xy, wh], axis=1) * strides[None]
    return jnp.concatenate([dbox, jax.nn.sigmoid(cls)], axis=1)


if __name__ == "__main__":
    key = jax.random.PRNGKey(0)
    k0, k1, k2 = jax.random.split(key, 3)

    # --- h_sigmoid (elementwise) ---
    x = jax.random.normal(k0, (2, 4, 16, 16), dtype=jnp.float32) * 4.0
    y = jax.block_until_ready(hard_sigmoid(x))
    y_ref = jnp.clip(x + 3.0, 0.0, 6.0) / 6.0
    assert y.shape == x.shape and y.dtype == x.dtype
    assert jnp.allclose(y, y_ref, atol=1e-6, rtol=1e-6)

    # --- fused detect decode (DFL + dist2bbox + strides + cls sigmoid) ---
    nc, reg_max = 80, 16
    hw = [(16, 16), (8, 8), (4, 4)]
    level_strides = [8.0, 16.0, 32.0]
    A = sum(h * w for h, w in hw)
    box = jax.random.normal(k1, (2, 4 * reg_max, A), dtype=jnp.float32)
    cls = jax.random.normal(k2, (2, nc, A), dtype=jnp.float32)
    anchors, strides = _make_anchors(hw, level_strides)

    yd = jax.block_until_ready(detect_decode(box, cls, anchors, strides))
    yd_ref = _decode_ref(box, cls, anchors, strides, reg_max)
    assert yd.shape == (2, 4 + nc, A) and yd.dtype == jnp.float32
    assert jnp.allclose(yd, yd_ref, atol=1e-3, rtol=1e-4)

    print("KERNEL_OK")
</pallas_src>

<mosaic_0001>
module attributes {stable_mosaic.version = 11 : i64} {
  func.func @_hard_sigmoid_kernel(%arg0: i32, %arg1: memref<16x128xf32, #tpu.memory_space<vmem>>, %arg2: memref<16x128xf32, #tpu.memory_space<vmem>>) attributes {dimension_semantics = [#tpu.dimension_semantics<parallel>], iteration_bounds = array<i64: 1>, scalar_prefetch = 0 : i64, scratch_operands = 0 : i64, tpu.core_type = #tpu.core_type<tc>, window_params = [{transform_indices = @transform_0, window_bounds = array<i64: 16, 128>}, {transform_indices = @transform_1, window_bounds = array<i64: 16, 128>}]} {
    %c0 = arith.constant 0 : index
    %c0_0 = arith.constant 0 : index
    %0 = vector.load %arg1[%c0, %c0_0] : memref<16x128xf32, #tpu.memory_space<vmem>>, vector<16x128xf32>
    %cst = arith.constant 3.000000e+00 : f32
    %1 = vector.broadcast %cst : f32 to vector<16x128xf32>
    %2 = arith.addf %0, %1 : vector<16x128xf32>
    %cst_1 = arith.constant 0.000000e+00 : f32
    %cst_2 = arith.constant 6.000000e+00 : f32
    %3 = vector.broadcast %cst_1 : f32 to vector<16x128xf32>
    %4 = arith.maximumf %3, %2 : vector<16x128xf32>
    %5 = vector.broadcast %cst_2 : f32 to vector<16x128xf32>
    %6 = arith.minimumf %5, %4 : vector<16x128xf32>
    %cst_3 = arith.constant 0.166666672 : f32
    %7 = vector.broadcast %cst_3 : f32 to vector<16x128xf32>
    %8 = arith.mulf %6, %7 : vector<16x128xf32>
    %c0_4 = arith.constant 0 : index
    %c0_5 = arith.constant 0 : index
    %9 = vector.load %arg2[%c0_4, %c0_5] : memref<16x128xf32, #tpu.memory_space<vmem>>, vector<16x128xf32>
    tpu.vector_store %arg2[%c0_4, %c0_5], %8 {strides = array<i32>} : memref<16x128xf32, #tpu.memory_space<vmem>>, vector<16x128xf32>,
    return
  }
  func.func @transform_0(%arg0: i32) -> (i32, i32) {
    %c0_i32 = arith.constant 0 : i32
    %c0_i32_0 = arith.constant 0 : i32
    return %arg0, %c0_i32 : i32, i32
  }
  func.func @transform_1(%arg0: i32) -> (i32, i32) {
    %c0_i32 = arith.constant 0 : i32
    %c0_i32_0 = arith.constant 0 : i32
    return %arg0, %c0_i32 : i32, i32
  }
}

</mosaic_0001>

<llo_original>
// kernel: tpu_custom_call.1
$region0: #{tpu_custom_call.1}
  #allocation0 [shape = 'u32[]', space=smem, size = 0x4, offset = 0x4, fixed_abs, tag = 'smem constant byte address 0x4 - core index']
  #allocation1 [shape = 'u32[144,128]{1,0:T(1,128)}', space=vmem, size = 0x12000, scoped, tag = 'internal scratch']
  %s0 = inlined_call_operand.hbm [shape: f32[16,128], index: 0, kind: input, shape index: {}]
  %s1 = inlined_call_operand.hbm [shape: f32[16,128], index: 1, kind: output, shape index: {}]
  %s2 = sld [smem:[#allocation0]]
  $region18: #{tpu_custom_call.1} parent=0
    _
  %s4 = ssub.s32 1, %s2
  %s5 = scalar_select 0, %s4, %s2
  $region1: #{tpu_custom_call.1} parent=0
    #allocation2 [shape = 'u8[8192]{0}', space=vmem, size = 0x2000, scoped, tag = 'input window, operand 0, single buffered']
    #allocation3 [shape = 's32[1]{0}', space=sflag, size = 0x4, scoped, tag = 'scoped memory for tpu_custom_call.1']
    #allocation4 [shape = 's32[1]{0}', space=sflag, size = 0x4, scoped, tag = 'scoped memory for tpu_custom_call.1']
    #allocation5 [shape = 'u8[8192]{0}', space=vmem, size = 0x2000, scoped, tag = 'output window, operand 0, single buffered']
    %6 = vsyncpa [#allocation3], 0
    %7 = vsyncpa [#allocation4], 0
    // Predicated region
    $region2: #{tpu_custom_call.1} parent=1 // pred_check
      _
    $region3: #{tpu_custom_call.1} parent=1 // pred_check_branch
      %9 = sbr.rel (0) target = $region5
    $region4: #{tpu_custom_call.1} parent=1 // pred_region
      %s11 = ssub.s32 256, 256
      %12 = vsyncadd [#allocation3], %s11
      %s13 = sshll.u32 [#allocation2], 4
      %s14 = int_to_ptr.vmem [resolvable:$true] %s13
      %19 = dma.hbm_to_vmem [thread:$0]  %s0, 256, %s14, [#allocation3], 128, 128, 8
    $region5: #{tpu_custom_call.1} parent=1 // pred_fallthru
      _
    // Predicated region
    $region6: #{tpu_custom_call.1} parent=1 // pred_check
      _
    $region7: #{tpu_custom_call.1} parent=1 // pred_check_branch
      %21 = sbr.rel (0) target = $region9
    $region8: #{tpu_custom_call.1} parent=1 // pred_region
      %22 = dma.done [#allocation3], 256
    $region9: #{tpu_custom_call.1} parent=1 // pred_fallthru
      _
    %v23 = vld [vmem:[#allocation2] sm:$0xff]
    %v24 = vld [vmem:[#allocation2 + $0x8] sm:$0xff]
    %v25 = vadd.f32 %v23, 3.0
    %v26 = vadd.f32 %v24, 3.0
    %v27 = vmax.f32 %v25, 0.0
    %v28 = vmax.f32 %v26, 0.0
    %v29 = vmin.f32 %v27, 6.0
    %v30 = vmin.f32 %v28, 6.0
    %v31 = vmul.f32 %v29, 0.16666667
    %v32 = vmul.f32 %v30, 0.16666667
    %33 = vst [vmem:[#allocation5] sm:$0xff] %v31
    %34 = vst [vmem:[#allocation5 + $0x8] sm:$0xff] %v32
    // Predicated region
    $region10: #{tpu_custom_call.1} parent=1 // pred_check
      _
    $region11: #{tpu_custom_call.1} parent=1 // pred_check_branch
      %36 = sbr.rel (0) target = $region13
    $region12: #{tpu_custom_call.1} parent=1 // pred_region
      %s38 = ssub.s32 256, 256
      %39 = vsyncadd [#allocation4], %s38
      %s40 = sshll.u32 [#allocation5], 4
      %s41 = int_to_ptr.vmem [resolvable:$true] %s40
      %46 = dma.vmem_to_hbm [thread:$0]  %s41, 256, %s1, [#allocation4], 128, 128, 8
    $region13: #{tpu_custom_call.1} parent=1 // pred_fallthru
      _
    // Predicated region
    $region14: #{tpu_custom_call.1} parent=1 // pred_check
      _
    $region15: #{tpu_custom_call.1} parent=1 // pred_check_branch
      %48 = sbr.rel (0) target = $region17
    $region16: #{tpu_custom_call.1} parent=1 // pred_region
      %49 = dma.done [#allocation4], 256
    $region17: #{tpu_custom_call.1} parent=1 // pred_fallthru
      _
    %50 = vsyncpa [#allocation3], 1
    %51 = vsyncpa [#allocation4], 1

</llo_original>
